<compile_context>
chip_gen: v5e
topology: v5e:2x2
jax: 0.10.0
libtpu: 0.0.40
codegen_flags: <defaults>
</compile_context>

<pallas_src>
import jax
import jax.numpy as jnp
from jax.experimental import pallas as pl
from jax.experimental.pallas import tpu as pltpu

LANE = 128                       # TPU lane width
_MIN_ROWS = 16                   # sublane pack for bf16 tiles (also satisfies f32's 8)
_DEFAULT_BLOCK_ROWS = 2048       # batch rows per grid step (raised from 256 per perf review)


def _round_up(x, m):
    return (x + m - 1) // m * m


def _dqn_kernel(x_ref, w1_ref, b1_ref, w2_ref, b2_ref, w3_ref, b3_ref, o_ref):
    # Cast activations to the weight dtype (bf16) on the VPU; accumulate in f32 on the MXU.
    x = x_ref[...].astype(w1_ref.dtype)
    # fc1 + relu
    h1 = jnp.dot(x, w1_ref[...], preferred_element_type=jnp.float32)
    h1 = jnp.maximum(h1 + b1_ref[...], 0.0)
    # fc2 + relu
    h2 = jnp.dot(h1.astype(w2_ref.dtype), w2_ref[...], preferred_element_type=jnp.float32)
    h2 = jnp.maximum(h2 + b2_ref[...], 0.0)
    # fc3 (linear head); bias add in f32, then cast to the (bf16) output dtype for the store.
    out = jnp.dot(h2.astype(w3_ref.dtype), w3_ref[...], preferred_element_type=jnp.float32)
    o_ref[...] = (out + b3_ref[...]).astype(o_ref.dtype)


def init_params(key, input_size=64, hidden_size=128, output_size=64):
    """Logical (torch-layout-equivalent) f32 params; mimics nn.Linear's U(-1/sqrt(fan_in), ..)."""
    ks = jax.random.split(key, 6)

    def linear(kw, kb, fan_in, fan_out):
        bound = 1.0 / jnp.sqrt(fan_in)
        w = jax.random.uniform(kw, (fan_in, fan_out), jnp.float32, -bound, bound)
        b = jax.random.uniform(kb, (1, fan_out), jnp.float32, -bound, bound)
        return w, b

    w1, b1 = linear(ks[0], ks[1], input_size, hidden_size)
    w2, b2 = linear(ks[2], ks[3], hidden_size, hidden_size)
    w3, b3 = linear(ks[4], ks[5], hidden_size, output_size)
    return {"w1": w1, "b1": b1, "w2": w2, "b2": b2, "w3": w3, "b3": b3}


def pack_params(params, compute_dtype=jnp.bfloat16):
    """One-time packing: pad *internal/output* feature dims to 128 lanes, cast weights to bf16.

    W1 keeps its true input dim (64) -- x is no longer feature-padded in the wrapper.
    Zero padding keeps the math identical (extra W3 columns are never read by the consumer).
    Biases stay f32 (added after the f32 accumulation).
    """
    w1, b1, w2, b2, w3, b3 = (params[k] for k in ("w1", "b1", "w2", "b2", "w3", "b3"))
    in_size, hidden = w1.shape
    out_size = w3.shape[1]
    hid_pad = _round_up(hidden, LANE)
    out_pad = _round_up(out_size, LANE)

    def pad2(a, rows, cols):
        return jnp.pad(a, ((0, rows - a.shape[0]), (0, cols - a.shape[1])))

    packed = {
        "w1": pad2(w1, in_size, hid_pad).astype(compute_dtype),   # (64, 128) -- no input-dim pad
        "b1": pad2(b1, 1, hid_pad).astype(jnp.float32),
        "w2": pad2(w2, hid_pad, hid_pad).astype(compute_dtype),
        "b2": pad2(b2, 1, hid_pad).astype(jnp.float32),
        "w3": pad2(w3, hid_pad, out_pad).astype(compute_dtype),
        "b3": pad2(b3, 1, out_pad).astype(jnp.float32),
    }
    meta = {"in_size": in_size, "out_size": out_size, "out_pad": out_pad,
            "compute_dtype": compute_dtype}
    return packed, meta


def _choose_batch_tiling(B, block_rows):
    """Divisor-aware tile: minimal padding waste, and >=2 grid steps when the batch can split
    (so v7x's two TensorCores both get work on the 'parallel' axis)."""
    B = max(B, 1)
    n_steps = pl.cdiv(B, block_rows)
    if B >= 2 * _MIN_ROWS:
        n_steps = max(n_steps, 2)
    tb = _round_up(pl.cdiv(B, n_steps), _MIN_ROWS)
    b_pad = _round_up(B, tb)
    return tb, b_pad


def dqn_forward(x, packed, meta, *, block_rows=_DEFAULT_BLOCK_ROWS,
                out_dtype=jnp.bfloat16, unpad=True):
    """x: (B, input_size) f32 (or bf16).  Returns (B, output_size) by default, or the raw
    padded (b_pad, out_pad) slab if unpad=False (lets the consumer fuse the slice)."""
    w1, b1, w2, b2, w3, b3 = (packed[k] for k in ("w1", "b1", "w2", "b2", "w3", "b3"))
    B, in_size = x.shape
    assert in_size == meta["in_size"], (in_size, meta["in_size"])
    out_pad = meta["out_pad"]
    hid = w2.shape[0]

    tb, b_pad = _choose_batch_tiling(B, block_rows)
    if b_pad != B:
        # Rows-only pad (no feature pad, no dtype cast) -- tiny, and a no-op when tb | B.
        x = jnp.pad(x, ((0, b_pad - B), (0, 0)))

    grid = (b_pad // tb,)
    tile = lambda shape: pl.BlockSpec(shape, lambda i: (i, 0))       # batch-tiled
    resident = lambda shape: pl.BlockSpec(shape, lambda i: (0, 0))   # fetched once, VMEM-resident

    flops = 2 * b_pad * (in_size * hid + hid * hid + hid * out_pad)
    bytes_accessed = (
        int(x.size) * x.dtype.itemsize
        + sum(int(a.size) * a.dtype.itemsize for a in (w1, b1, w2, b2, w3, b3))
        + b_pad * out_pad * jnp.dtype(out_dtype).itemsize)

    out = pl.pallas_call(
        _dqn_kernel,
        out_shape=jax.ShapeDtypeStruct((b_pad, out_pad), out_dtype),
        grid=grid,
        in_specs=[
            tile((tb, in_size)),                       # x: full 64-wide minor dim, f32
            resident(w1.shape), resident(b1.shape),
            resident(w2.shape), resident(b2.shape),
            resident(w3.shape), resident(b3.shape),
        ],
        out_specs=tile((tb, out_pad)),                 # 128-lane-wide bf16 slab, unmasked vst
        compiler_params=pltpu.CompilerParams(
            dimension_semantics=("parallel",),
            # default scoped VMEM limit is ample: <=~2 MiB of double-buffered tiles at TB=2048
        ),
        cost_estimate=pl.CostEstimate(flops=int(flops), transcendentals=0,
                                      bytes_accessed=int(bytes_accessed)),
    )(x, w1, b1, w2, b2, w3, b3)

    if unpad:
        return out[:B, :meta["out_size"]]
    return out


def dqn_reference(x, params, compute_dtype=jnp.bfloat16):
    """Pure-JAX reference applying the same bf16 quantization as the kernel's MXU path."""
    f32 = jnp.float32
    q = lambda a: a.astype(compute_dtype).astype(f32)
    h = jnp.maximum(q(x) @ q(params["w1"]) + params["b1"], 0.0)
    h = jnp.maximum(q(h) @ q(params["w2"]) + params["b2"], 0.0)
    return q(h) @ q(params["w3"]) + params["b3"]


if __name__ == "__main__":
    key = jax.random.PRNGKey(0)
    k_param, k_x1, k_x2 = jax.random.split(key, 3)

    INPUT, HIDDEN, OUTPUT = 64, 128, 64
    params = init_params(k_param, INPUT, HIDDEN, OUTPUT)
    packed, meta = pack_params(params, compute_dtype=jnp.bfloat16)

    # Small inference-style batch (single grid step, padded to one 16-row tile).
    x_small = jax.random.normal(k_x1, (8, INPUT), jnp.float32)
    out_small = jax.block_until_ready(dqn_forward(x_small, packed, meta))
    ref_small = dqn_reference(x_small, params)
    assert out_small.shape == (8, OUTPUT), out_small.shape
    assert jnp.allclose(out_small.astype(jnp.float32), ref_small, atol=2e-2, rtol=2e-2), \
        "mismatch (small batch)"

    # Larger, non-tile-aligned batch: divisor-aware tiling -> tb=160, b_pad=320, grid=2.
    # Production consumers keep the padded slab (unpad=False); slice here only for the check.
    x_big = jax.random.normal(k_x2, (300, INPUT), jnp.float32)
    out_big_slab = jax.block_until_ready(dqn_forward(x_big, packed, meta, unpad=False))
    out_big = out_big_slab[:300, :OUTPUT].astype(jnp.float32)
    ref_big = dqn_reference(x_big, params)
    assert out_big.shape == (300, OUTPUT), out_big.shape
    assert jnp.allclose(out_big, ref_big, atol=2e-2, rtol=2e-2), "mismatch (large batch)"

    print("KERNEL_OK")
</pallas_src>

<mosaic_0001>
module attributes {stable_mosaic.version = 11 : i64} {
  func.func @_dqn_kernel(%arg0: i32, %arg1: memref<16x64xf32, #tpu.memory_space<vmem>>, %arg2: memref<64x128xbf16, #tpu.memory_space<vmem>>, %arg3: memref<1x128xf32, #tpu.memory_space<vmem>>, %arg4: memref<128x128xbf16, #tpu.memory_space<vmem>>, %arg5: memref<1x128xf32, #tpu.memory_space<vmem>>, %arg6: memref<128x128xbf16, #tpu.memory_space<vmem>>, %arg7: memref<1x128xf32, #tpu.memory_space<vmem>>, %arg8: memref<16x128xbf16, #tpu.memory_space<vmem>>) attributes {dimension_semantics = [#tpu.dimension_semantics<parallel>], iteration_bounds = array<i64: 1>, scalar_prefetch = 0 : i64, scratch_operands = 0 : i64, tpu.core_type = #tpu.core_type<tc>, window_params = [{transform_indices = @transform_0, window_bounds = array<i64: 16, 64>}, {pipeline_mode = #tpu.pipeline_mode<synchronous>, transform_indices = @transform_1, window_bounds = array<i64: 64, 128>}, {pipeline_mode = #tpu.pipeline_mode<synchronous>, transform_indices = @transform_2, window_bounds = array<i64: 1, 128>}, {pipeline_mode = #tpu.pipeline_mode<synchronous>, transform_indices = @transform_3, window_bounds = array<i64: 128, 128>}, {pipeline_mode = #tpu.pipeline_mode<synchronous>, transform_indices = @transform_4, window_bounds = array<i64: 1, 128>}, {pipeline_mode = #tpu.pipeline_mode<synchronous>, transform_indices = @transform_5, window_bounds = array<i64: 128, 128>}, {pipeline_mode = #tpu.pipeline_mode<synchronous>, transform_indices = @transform_6, window_bounds = array<i64: 1, 128>}, {transform_indices = @transform_7, window_bounds = array<i64: 16, 128>}]} {
    %c0 = arith.constant 0 : index
    %c0_0 = arith.constant 0 : index
    %0 = vector.load %arg1[%c0, %c0_0] : memref<16x64xf32, #tpu.memory_space<vmem>>, vector<16x64xf32>
    %1 = arith.truncf %0 : vector<16x64xf32> to vector<16x64xbf16>
    %c0_1 = arith.constant 0 : index
    %c0_2 = arith.constant 0 : index
    %2 = vector.load %arg2[%c0_1, %c0_2] : memref<64x128xbf16, #tpu.memory_space<vmem>>, vector<64x128xbf16>
    %cst = arith.constant dense<0.000000e+00> : vector<16x128xf32>
    %3 = tpu.matmul %1, %2, %cst {dimension_numbers = #tpu.dot_dimension_numbers<[1], [0], [0], [1], [0, 0, 1, 1], [], []>} : vector<16x64xbf16>, vector<64x128xbf16>, vector<16x128xf32> -> vector<16x128xf32>
    %c0_3 = arith.constant 0 : index
    %c0_4 = arith.constant 0 : index
    %4 = vector.load %arg3[%c0_3, %c0_4] : memref<1x128xf32, #tpu.memory_space<vmem>>, vector<1x128xf32>
    %5 = vector.broadcast %4 : vector<1x128xf32> to vector<16x128xf32>
    %6 = arith.addf %3, %5 : vector<16x128xf32>
    %cst_5 = arith.constant 0.000000e+00 : f32
    %7 = vector.broadcast %cst_5 : f32 to vector<16x128xf32>
    %8 = arith.maximumf %6, %7 : vector<16x128xf32>
    %9 = arith.truncf %8 : vector<16x128xf32> to vector<16x128xbf16>
    %c0_6 = arith.constant 0 : index
    %c0_7 = arith.constant 0 : index
    %10 = vector.load %arg4[%c0_6, %c0_7] : memref<128x128xbf16, #tpu.memory_space<vmem>>, vector<128x128xbf16>
    %cst_8 = arith.constant dense<0.000000e+00> : vector<16x128xf32>
    %11 = tpu.matmul %9, %10, %cst_8 {dimension_numbers = #tpu.dot_dimension_numbers<[1], [0], [0], [1], [0, 0, 1, 1], [], []>} : vector<16x128xbf16>, vector<128x128xbf16>, vector<16x128xf32> -> vector<16x128xf32>
    %c0_9 = arith.constant 0 : index
    %c0_10 = arith.constant 0 : index
    %12 = vector.load %arg5[%c0_9, %c0_10] : memref<1x128xf32, #tpu.memory_space<vmem>>, vector<1x128xf32>
    %13 = vector.broadcast %12 : vector<1x128xf32> to vector<16x128xf32>
    %14 = arith.addf %11, %13 : vector<16x128xf32>
    %cst_11 = arith.constant 0.000000e+00 : f32
    %15 = vector.broadcast %cst_11 : f32 to vector<16x128xf32>
    %16 = arith.maximumf %14, %15 : vector<16x128xf32>
    %17 = arith.truncf %16 : vector<16x128xf32> to vector<16x128xbf16>
    %c0_12 = arith.constant 0 : index
    %c0_13 = arith.constant 0 : index
    %18 = vector.load %arg6[%c0_12, %c0_13] : memref<128x128xbf16, #tpu.memory_space<vmem>>, vector<128x128xbf16>
    %cst_14 = arith.constant dense<0.000000e+00> : vector<16x128xf32>
    %19 = tpu.matmul %17, %18, %cst_14 {dimension_numbers = #tpu.dot_dimension_numbers<[1], [0], [0], [1], [0, 0, 1, 1], [], []>} : vector<16x128xbf16>, vector<128x128xbf16>, vector<16x128xf32> -> vector<16x128xf32>
    %c0_15 = arith.constant 0 : index
    %c0_16 = arith.constant 0 : index
    %20 = vector.load %arg7[%c0_15, %c0_16] : memref<1x128xf32, #tpu.memory_space<vmem>>, vector<1x128xf32>
    %21 = vector.broadcast %20 : vector<1x128xf32> to vector<16x128xf32>
    %22 = arith.addf %19, %21 : vector<16x128xf32>
    %23 = arith.truncf %22 : vector<16x128xf32> to vector<16x128xbf16>
    %c0_17 = arith.constant 0 : index
    %c0_18 = arith.constant 0 : index
    %24 = vector.load %arg8[%c0_17, %c0_18] : memref<16x128xbf16, #tpu.memory_space<vmem>>, vector<16x128xbf16>
    tpu.vector_store %arg8[%c0_17, %c0_18], %23 {strides = array<i32>} : memref<16x128xbf16, #tpu.memory_space<vmem>>, vector<16x128xbf16>,
    return
  }
  func.func @transform_0(%arg0: i32) -> (i32, i32) {
    %c0_i32 = arith.constant 0 : i32
    %c0_i32_0 = arith.constant 0 : i32
    return %arg0, %c0_i32 : i32, i32
  }
  func.func @transform_1(%arg0: i32) -> (i32, i32) {
    %c0_i32 = arith.constant 0 : i32
    %c0_i32_0 = arith.constant 0 : i32
    %c0_i32_1 = arith.constant 0 : i32
    return %c0_i32, %c0_i32_0 : i32, i32
  }
  func.func @transform_2(%arg0: i32) -> (i32, i32) {
    %c0_i32 = arith.constant 0 : i32
    %c0_i32_0 = arith.constant 0 : i32
    %c0_i32_1 = arith.constant 0 : i32
    return %c0_i32, %c0_i32_0 : i32, i32
  }
  func.func @transform_3(%arg0: i32) -> (i32, i32) {
    %c0_i32 = arith.constant 0 : i32
    %c0_i32_0 = arith.constant 0 : i32
    %c0_i32_1 = arith.constant 0 : i32
    return %c0_i32, %c0_i32_0 : i32, i32
  }
  func.func @transform_4(%arg0: i32) -> (i32, i32) {
    %c0_i32 = arith.constant 0 : i32
    %c0_i32_0 = arith.constant 0 : i32
    %c0_i32_1 = arith.constant 0 : i32
    return %c0_i32, %c0_i32_0 : i32, i32
  }
  func.func @transform_5(%arg0: i32) -> (i32, i32) {
    %c0_i32 = arith.constant 0 : i32
    %c0_i32_0 = arith.constant 0 : i32
    %c0_i32_1 = arith.constant 0 : i32
    return %c0_i32, %c0_i32_0 : i32, i32
  }
  func.func @transform_6(%arg0: i32) -> (i32, i32) {
    %c0_i32 = arith.constant 0 : i32
    %c0_i32_0 = arith.constant 0 : i32
    %c0_i32_1 = arith.constant 0 : i32
    return %c0_i32, %c0_i32_0 : i32, i32
  }
  func.func @transform_7(%arg0: i32) -> (i32, i32) {
    %c0_i32 = arith.constant 0 : i32
    %c0_i32_0 = arith.constant 0 : i32
    return %arg0, %c0_i32 : i32, i32
  }
}

</mosaic_0001>

<llo_original>
// kernel: tpu_custom_call.1
$region0: #{tpu_custom_call.1}
  #allocation0 [shape = 'u32[]', space=smem, size = 0x4, offset = 0x4, fixed_abs, tag = 'smem constant byte address 0x4 - core index']
  #allocation1 [shape = 'u32[72,128]{1,0:T(1,128)}', space=vmem, size = 0x9000, scoped, tag = 'internal scratch']
  %s0 = inlined_call_operand.hbm [shape: f32[16,64], index: 0, kind: input, shape index: {}]
  %s1 = inlined_call_operand.hbm [shape: bf16[64,128], index: 1, kind: input, shape index: {}]
  %s2 = inlined_call_operand.vmem [shape: f32[1,128], index: 2, kind: input, shape index: {}]
  %s3 = inlined_call_operand.hbm [shape: bf16[128,128], index: 3, kind: input, shape index: {}]
  %s4 = inlined_call_operand.vmem [shape: f32[1,128], index: 4, kind: input, shape index: {}]
  %s5 = inlined_call_operand.hbm [shape: bf16[128,128], index: 5, kind: input, shape index: {}]
  %s6 = inlined_call_operand.vmem [shape: f32[1,128], index: 6, kind: input, shape index: {}]
  %s7 = inlined_call_operand.hbm [shape: bf16[16,128], index: 7, kind: output, shape index: {}]
  %s8 = sld [smem:[#allocation0]]
  $region54: #{tpu_custom_call.1} parent=0
    _
  %s10 = ssub.s32 1, %s8
  %s11 = scalar_select 0, %s10, %s8
  $region1: #{tpu_custom_call.1} parent=0
    #allocation2 [shape = 'u8[8192]{0}', space=vmem, size = 0x2000, scoped, tag = 'input window, operand 0, single buffered']
    #allocation3 [shape = 's32[1]{0}', space=sflag, size = 0x4, scoped, tag = 'scoped memory for tpu_custom_call.1']
    #allocation4 [shape = 's32[1]{0}', space=sflag, size = 0x4, scoped, tag = 'scoped memory for tpu_custom_call.1']
    #allocation5 [shape = 'u8[16384]{0}', space=vmem, size = 0x4000, scoped, tag = 'input window, operand 1, single buffered']
    #allocation6 [shape = 's32[1]{0}', space=sflag, size = 0x4, scoped, tag = 'scoped memory for tpu_custom_call.1']
    #allocation7 [shape = 'u8[32768]{0}', space=vmem, size = 0x8000, scoped, tag = 'input window, operand 3, single buffered']
    #allocation8 [shape = 'u8[32768]{0}', space=vmem, size = 0x8000, scoped, tag = 'input window, operand 5, single buffered']
    #allocation9 [shape = 's32[1]{0}', space=sflag, size = 0x4, scoped, tag = 'scoped memory for tpu_custom_call.1']
    #allocation10 [shape = 'u8[4096]{0}', space=vmem, size = 0x1000, scoped, tag = 'output window, operand 0, single buffered']
    %12 = vsyncpa [#allocation3], 0
    %13 = vsyncpa [#allocation6], 0
    %14 = vsyncpa [#allocation9], 0
    %15 = vsyncpa [#allocation4], 0
    // Predicated region
    $region2: #{tpu_custom_call.1} parent=1 // pred_check
      _
    $region3: #{tpu_custom_call.1} parent=1 // pred_check_branch
      %17 = sbr.rel (0) target = $region5
    $region4: #{tpu_custom_call.1} parent=1 // pred_region
      %19 = vsyncadd [#allocation3], 0
      %s20 = sshll.u32 %s0, 4
      %s21 = int_to_ptr.hbm [resolvable:$true] %s20
      %s22 = sshll.u32 [#allocation2], 4
      %s23 = int_to_ptr.vmem [resolvable:$true] %s22
      %28 = dma.hbm_to_vmem [thread:$0]  %s21, 256, %s23, [#allocation3], 128, 128, 8
    $region5: #{tpu_custom_call.1} parent=1 // pred_fallthru
      _
    // Predicated region
    $region6: #{tpu_custom_call.1} parent=1 // pred_check
      _
    $region7: #{tpu_custom_call.1} parent=1 // pred_check_branch
      %30 = sbr.rel (0) target = $region9
    $region8: #{tpu_custom_call.1} parent=1 // pred_region
      %32 = vsyncadd [#allocation6], 0
      %s33 = sshll.u32 %s1, 4
      %s34 = int_to_ptr.hbm [resolvable:$true] %s33
      %s35 = sshll.u32 [#allocation5], 4
      %s36 = int_to_ptr.vmem [resolvable:$true] %s35
      %41 = dma.hbm_to_vmem [thread:$0]  %s34, 512, %s36, [#allocation6], 64, 64, 4
    $region9: #{tpu_custom_call.1} parent=1 // pred_fallthru
      _
    // Predicated region
    $region10: #{tpu_custom_call.1} parent=1 // pred_check
      _
    $region11: #{tpu_custom_call.1} parent=1 // pred_check_branch
      %43 = sbr.rel (0) target = $region13
    $region12: #{tpu_custom_call.1} parent=1 // pred_region
      _
    $region13: #{tpu_custom_call.1} parent=1 // pred_fallthru
      _
    // Predicated region
    $region14: #{tpu_custom_call.1} parent=1 // pred_check
      _
    $region15: #{tpu_custom_call.1} parent=1 // pred_check_branch
      %45 = sbr.rel (0) target = $region17
    $region16: #{tpu_custom_call.1} parent=1 // pred_region
      %47 = vsyncadd [#allocation6], 0
      %s48 = sshll.u32 %s3, 4
      %s49 = int_to_ptr.hbm [resolvable:$true] %s48
      %s50 = sshll.u32 [#allocation7], 4
      %s51 = int_to_ptr.vmem [resolvable:$true] %s50
      %56 = dma.hbm_to_vmem [thread:$0]  %s49, 1024, %s51, [#allocation6], 64, 64, 4
    $region17: #{tpu_custom_call.1} parent=1 // pred_fallthru
      _
    // Predicated region
    $region18: #{tpu_custom_call.1} parent=1 // pred_check
      _
    $region19: #{tpu_custom_call.1} parent=1 // pred_check_branch
      %58 = sbr.rel (0) target = $region21
    $region20: #{tpu_custom_call.1} parent=1 // pred_region
      _
    $region21: #{tpu_custom_call.1} parent=1 // pred_fallthru
      _
    // Predicated region
    $region22: #{tpu_custom_call.1} parent=1 // pred_check
      _
    $region23: #{tpu_custom_call.1} parent=1 // pred_check_branch
      %60 = sbr.rel (0) target = $region25
    $region24: #{tpu_custom_call.1} parent=1 // pred_region
      %62 = vsyncadd [#allocation9], 0
      %s63 = sshll.u32 %s5, 4
      %s64 = int_to_ptr.hbm [resolvable:$true] %s63
      %s65 = sshll.u32 [#allocation8], 4
      %s66 = int_to_ptr.vmem [resolvable:$true] %s65
      %71 = dma.hbm_to_vmem [thread:$0]  %s64, 1024, %s66, [#allocation9], 64, 64, 4
    $region25: #{tpu_custom_call.1} parent=1 // pred_fallthru
      _
    // Predicated region
    $region26: #{tpu_custom_call.1} parent=1 // pred_check
      _
    $region27: #{tpu_custom_call.1} parent=1 // pred_check_branch
      %73 = sbr.rel (0) target = $region29
    $region28: #{tpu_custom_call.1} parent=1 // pred_region
      _
    $region29: #{tpu_custom_call.1} parent=1 // pred_fallthru
      _
    // Predicated region
    $region30: #{tpu_custom_call.1} parent=1 // pred_check
      _
    $region31: #{tpu_custom_call.1} parent=1 // pred_check_branch
      %75 = sbr.rel (0) target = $region33
    $region32: #{tpu_custom_call.1} parent=1 // pred_region
      %77 = dma.done [#allocation3], 256
    $region33: #{tpu_custom_call.1} parent=1 // pred_fallthru
      _
    // Predicated region
    $region34: #{tpu_custom_call.1} parent=1 // pred_check
      _
    $region35: #{tpu_custom_call.1} parent=1 // pred_check_branch
      %79 = sbr.rel (0) target = $region37
    $region36: #{tpu_custom_call.1} parent=1 // pred_region
      %81 = dma.done [#allocation6], 512
    $region37: #{tpu_custom_call.1} parent=1 // pred_fallthru
      _
    // Predicated region
    $region38: #{tpu_custom_call.1} parent=1 // pred_check
      _
    $region39: #{tpu_custom_call.1} parent=1 // pred_check_branch
      %83 = sbr.rel (0) target = $region41
    $region40: #{tpu_custom_call.1} parent=1 // pred_region
      %85 = dma.done [#allocation6], 1024
    $region41: #{tpu_custom_call.1} parent=1 // pred_fallthru
      _
    // Predicated region
    $region42: #{tpu_custom_call.1} parent=1 // pred_check
      _
    $region43: #{tpu_custom_call.1} parent=1 // pred_check_branch
      %87 = sbr.rel (0) target = $region45
    $region44: #{tpu_custom_call.1} parent=1 // pred_region
      %89 = dma.done [#allocation9], 1024
    $region45: #{tpu_custom_call.1} parent=1 // pred_fallthru
      _
    %v91 = vld [vmem:[#allocation2] sm:$0xff]
    %v92 = vld [vmem:[#allocation2 + $0x8] sm:$0xff]
    %v93 = vpack.c.bf16 %v92, %v91
    %v94 = vld [vmem:[#allocation5] sm:$0xf]
    %v95 = vld [vmem:[#allocation5 + $0x4] sm:$0xf]
    %v96 = vld [vmem:[#allocation5 + $0x8] sm:$0xf]
    %v97 = vld [vmem:[#allocation5 + $0xc] sm:$0xf]
    %v98 = vld [vmem:[#allocation5 + $0x10] sm:$0xf]
    %v99 = vld [vmem:[#allocation5 + $0x14] sm:$0xf]
    %v100 = vld [vmem:[#allocation5 + $0x18] sm:$0xf]
    %v101 = vld [vmem:[#allocation5 + $0x1c] sm:$0xf]
    %v102 = vld [vmem:[%s2] sm:$0x1]
    %v104 = vperm.slane %v102, 0
    %v114 = vunpack.c.l.b16 %v94
    %v115 = vunpack.c.l.b16 %v95
    %v116 = vunpack.c.l.b16 %v96
    %v117 = vunpack.c.l.b16 %v97
    %v118 = vunpack.c.l.b16 %v98
    %v119 = vunpack.c.l.b16 %v99
    %v120 = vunpack.c.l.b16 %v100
    %v121 = vunpack.c.l.b16 %v101
    %v122 = vpack.c.b16 %v115, %v114
    %v123 = vpack.c.b16 %v117, %v116
    %v124 = vpack.c.b16 %v119, %v118
    %v125 = vpack.c.b16 %v121, %v120
    %vm130 = vcmask 523264
    %v132 = vsel %vm130, %v93, 0
    %134 = vmatpush.bf16.msra.mxu0 0
    %135 = vmatpush.bf16.msra.mxu0 0
    %136 = vmatpush.bf16.msra.mxu0 0
    %137 = vmatpush.bf16.msra.mxu0 0
    %138 = vmatpush.bf16.msra.mxu0 %v125
    %139 = vmatpush.bf16.msra.mxu0 %v124
    %140 = vmatpush.bf16.msra.mxu0 %v123
    %141 = vmatpush.bf16.msra.mxu0 %v122
    %142 = vmatmul.bf16.gmra.mxu0 %v132
    %v143 = vpop.f32.mrf.mxu0
    %v144 = vadd.f32 %v104, %v143
    %v145 = vpop.f32.mrf.mxu0
    %v146 = vadd.f32 %v104, %v145
    %147 = vdwg.mxu0
    %v148 = vmax.f32 %v144, 0.0
    %v149 = vmax.f32 %v146, 0.0
    %v150 = vpack.c.bf16 %v149, %v148
    %v151 = vld [vmem:[#allocation7] sm:$0xf]
    %v152 = vld [vmem:[#allocation7 + $0x4] sm:$0xf]
    %v153 = vld [vmem:[#allocation7 + $0x8] sm:$0xf]
    %v154 = vld [vmem:[#allocation7 + $0xc] sm:$0xf]
    %v155 = vld [vmem:[#allocation7 + $0x10] sm:$0xf]
    %v156 = vld [vmem:[#allocation7 + $0x14] sm:$0xf]
    %v157 = vld [vmem:[#allocation7 + $0x18] sm:$0xf]
    %v158 = vld [vmem:[#allocation7 + $0x1c] sm:$0xf]
    %v159 = vld [vmem:[#allocation7 + $0x20] sm:$0xf]
    %v160 = vld [vmem:[#allocation7 + $0x24] sm:$0xf]
    %v161 = vld [vmem:[#allocation7 + $0x28] sm:$0xf]
    %v162 = vld [vmem:[#allocation7 + $0x2c] sm:$0xf]
    %v163 = vld [vmem:[#allocation7 + $0x30] sm:$0xf]
    %v164 = vld [vmem:[#allocation7 + $0x34] sm:$0xf]
    %v165 = vld [vmem:[#allocation7 + $0x38] sm:$0xf]
    %v166 = vld [vmem:[#allocation7 + $0x3c] sm:$0xf]
    %v167 = vld [vmem:[%s4] sm:$0x1]
    %v169 = vperm.slane %v167, 0
    %v187 = vunpack.c.l.b16 %v151
    %v188 = vunpack.c.l.b16 %v152
    %v189 = vunpack.c.l.b16 %v153
    %v190 = vunpack.c.l.b16 %v154
    %v191 = vunpack.c.l.b16 %v155
    %v192 = vunpack.c.l.b16 %v156
    %v193 = vunpack.c.l.b16 %v157
    %v194 = vunpack.c.l.b16 %v158
    %v195 = vunpack.c.l.b16 %v159
    %v196 = vunpack.c.l.b16 %v160
    %v197 = vunpack.c.l.b16 %v161
    %v198 = vunpack.c.l.b16 %v162
    %v199 = vunpack.c.l.b16 %v163
    %v200 = vunpack.c.l.b16 %v164
    %v201 = vunpack.c.l.b16 %v165
    %v202 = vunpack.c.l.b16 %v166
    %v203 = vpack.c.b16 %v188, %v187
    %v204 = vpack.c.b16 %v190, %v189
    %v205 = vpack.c.b16 %v192, %v191
    %v206 = vpack.c.b16 %v194, %v193
    %v207 = vpack.c.b16 %v196, %v195
    %v208 = vpack.c.b16 %v198, %v197
    %v209 = vpack.c.b16 %v200, %v199
    %v210 = vpack.c.b16 %v202, %v201
    %219 = vmatpush.bf16.msra.mxu0 %v210
    %220 = vmatpush.bf16.msra.mxu0 %v209
    %221 = vmatpush.bf16.msra.mxu0 %v208
    %222 = vmatpush.bf16.msra.mxu0 %v207
    %223 = vmatpush.bf16.msra.mxu0 %v206
    %224 = vmatpush.bf16.msra.mxu0 %v205
    %225 = vmatpush.bf16.msra.mxu0 %v204
    %226 = vmatpush.bf16.msra.mxu0 %v203
    %227 = vmatmul.bf16.gmra.mxu0 %v150
    %v228 = vpop.f32.mrf.mxu0
    %v229 = vadd.f32 %v169, %v228
    %v230 = vpop.f32.mrf.mxu0
    %v231 = vadd.f32 %v169, %v230
    %232 = vdwg.mxu0
    %v233 = vmax.f32 %v229, 0.0
    %v234 = vmax.f32 %v231, 0.0
    %v235 = vpack.c.bf16 %v234, %v233
    %v236 = vld [vmem:[#allocation8] sm:$0xf]
    %v237 = vld [vmem:[#allocation8 + $0x4] sm:$0xf]
    %v238 = vld [vmem:[#allocation8 + $0x8] sm:$0xf]
    %v239 = vld [vmem:[#allocation8 + $0xc] sm:$0xf]
    %v240 = vld [vmem:[#allocation8 + $0x10] sm:$0xf]
    %v241 = vld [vmem:[#allocation8 + $0x14] sm:$0xf]
    %v242 = vld [vmem:[#allocation8 + $0x18] sm:$0xf]
    %v243 = vld [vmem:[#allocation8 + $0x1c] sm:$0xf]
    %v244 = vld [vmem:[#allocation8 + $0x20] sm:$0xf]
    %v245 = vld [vmem:[#allocation8 + $0x24] sm:$0xf]
    %v246 = vld [vmem:[#allocation8 + $0x28] sm:$0xf]
    %v247 = vld [vmem:[#allocation8 + $0x2c] sm:$0xf]
    %v248 = vld [vmem:[#allocation8 + $0x30] sm:$0xf]
    %v249 = vld [vmem:[#allocation8 + $0x34] sm:$0xf]
    %v250 = vld [vmem:[#allocation8 + $0x38] sm:$0xf]
    %v251 = vld [vmem:[#allocation8 + $0x3c] sm:$0xf]
    %v252 = vld [vmem:[%s6] sm:$0x1]
    %v254 = vperm.slane %v252, 0
    %v272 = vunpack.c.l.b16 %v236
    %v273 = vunpack.c.l.b16 %v237
    %v274 = vunpack.c.l.b16 %v238
    %v275 = vunpack.c.l.b16 %v239
    %v276 = vunpack.c.l.b16 %v240
    %v277 = vunpack.c.l.b16 %v241
    %v278 = vunpack.c.l.b16 %v242
    %v279 = vunpack.c.l.b16 %v243
    %v280 = vunpack.c.l.b16 %v244
    %v281 = vunpack.c.l.b16 %v245
    %v282 = vunpack.c.l.b16 %v246
    %v283 = vunpack.c.l.b16 %v247
    %v284 = vunpack.c.l.b16 %v248
    %v285 = vunpack.c.l.b16 %v249
    %v286 = vunpack.c.l.b16 %v250
    %v287 = vunpack.c.l.b16 %v251
    %v288 = vpack.c.b16 %v273, %v272
    %v289 = vpack.c.b16 %v275, %v274
    %v290 = vpack.c.b16 %v277, %v276
    %v291 = vpack.c.b16 %v279, %v278
    %v292 = vpack.c.b16 %v281, %v280
    %v293 = vpack.c.b16 %v283, %v282
    %v294 = vpack.c.b16 %v285, %v284
    %v295 = vpack.c.b16 %v287, %v286
    %304 = vmatpush.bf16.msra.mxu0 %v295
    %305 = vmatpush.bf16.msra.mxu0 %v294
    %306 = vmatpush.bf16.msra.mxu0 %v293
    %307 = vmatpush.bf16.msra.mxu0 %v292
    %308 = vmatpush.bf16.msra.mxu0 %v291
    %309 = vmatpush.bf16.msra.mxu0 %v290
    %310 = vmatpush.bf16.msra.mxu0 %v289
    %311 = vmatpush.bf16.msra.mxu0 %v288
    %312 = vmatmul.bf16.gmra.mxu0 %v235
    %v313 = vpop.f32.mrf.mxu0
    %v314 = vadd.f32 %v254, %v313
    %v315 = vpop.f32.mrf.mxu0
    %v316 = vadd.f32 %v254, %v315
    %317 = vdwg.mxu0
    %v318 = vpack.c.bf16 %v314, %v314
    %v319 = vpack.c.bf16 %v316, %v316
    %320 = vst [vmem:[#allocation10] sm:$0xf] %v318
    %321 = vst [vmem:[#allocation10 + $0x4] sm:$0xf] %v319
    // Predicated region
    $region46: #{tpu_custom_call.1} parent=1 // pred_check
      _
    $region47: #{tpu_custom_call.1} parent=1 // pred_check_branch
      %323 = sbr.rel (0) target = $region49
    $region48: #{tpu_custom_call.1} parent=1 // pred_region
      %325 = vsyncadd [#allocation4], 0
      %s326 = sshll.u32 [#allocation10], 4
      %s327 = int_to_ptr.vmem [resolvable:$true] %s326
      %s328 = sshll.u32 %s7, 4
      %s329 = int_to_ptr.hbm [resolvable:$true] %s328
      %334 = dma.vmem_to_hbm [thread:$0]  %s327, 128, %s329, [#allocation4], 64, 64, 4
    $region49: #{tpu_custom_call.1} parent=1 // pred_fallthru
      _
    // Predicated region
    $region50: #{tpu_custom_call.1} parent=1 // pred_check
      _
    $region51: #{tpu_custom_call.1} parent=1 // pred_check_branch
      %336 = sbr.rel (0) target = $region53
    $region52: #{tpu_custom_call.1} parent=1 // pred_region
      %338 = dma.done [#allocation4], 128
    $region53: #{tpu_custom_call.1} parent=1 // pred_fallthru
      _
    %339 = vsyncpa [#allocation3], 1
    %340 = vsyncpa [#allocation6], 1
    %341 = vsyncpa [#allocation9], 1
    %342 = vsyncpa [#allocation4], 1

</llo_original>
